<compile_context>
chip_gen: v6e
topology: v6e:2x2x1
jax: 0.10.0
libtpu: 0.0.40
codegen_flags: <defaults>
</compile_context>

<pallas_src>
import functools
import math

import numpy as np
import jax
import jax.numpy as jnp
from jax import lax
from jax.experimental import pallas as pl


def mha_kernel(x_ref, wqkv_ref, bqkv_ref, wo_ref, bo_ref, mask_ref, o_ref,
               *, num_heads, head_size):
    """Single invocation: the whole (B*T, C) problem lives in VMEM.

    Fused QKV projection -> head-packed attention (one score matmul, one
    softmax, one P@V covering all heads AND batch elements) -> one output
    projection.
    """
    BT, C = x_ref.shape            # B*T rows, C = H*D channels
    H, D = num_heads, head_size

    x = x_ref[...]

    # Fused QKV projection: (B*T, C) @ (C, 3C) + (1, 3C) -> one MXU pass.
    # 1/sqrt(D) is already folded into W_q / b_q at pack time.
    qkv = jnp.dot(x, wqkv_ref[...],
                  preferred_element_type=jnp.float32) + bqkv_ref[...]
    q = qkv[:, 0 * C:1 * C]
    k = qkv[:, 1 * C:2 * C]
    v = qkv[:, 2 * C:3 * C]

    # Head-pack: move the head index from lanes to sublanes,
    # (B*T, H*D) -> (H*B*T, D), rows ordered (h, b, t).  Implemented with
    # static lane slices + one sublane concat for robust Mosaic lowering
    # (pltpu.einshape / a 4-D transpose would express the same relayout).
    def head_pack(a):
        return jnp.concatenate([a[:, h * D:(h + 1) * D] for h in range(H)],
                               axis=0)

    qp = head_pack(q)              # (H*B*T, D)
    kp = head_pack(k)
    vp = head_pack(v)

    # One score matmul for every (head, batch) pair at once; cross-block
    # entries are removed by the additive mask below.  Contraction is over
    # the last dim of both operands (q @ k^T without materializing k^T).
    # TODO(synk): confirm with pl.lower_as_mlir that Mosaic emits no XLU
    # vxpose of kp here; if it does, build kp pre-transposed as (D, H*B*T).
    s = lax.dot_general(qp, kp, (((1,), (1,)), ((), ())),
                        preferred_element_type=jnp.float32)   # (HBT, HBT)

    # Block-diagonal causal additive bias: 0 where attended, -1e30 where
    # masked (covers the causal constraint AND the cross-head / cross-batch
    # blocks).  -1e30 rather than -inf: after row-max subtraction masked
    # entries stay ~-1e30 and exp() flushes them to exactly 0 in f32 without
    # any -inf arithmetic.  NOTE: revisit this constant if accumulation ever
    # moves to bf16.
    s = s + mask_ref[...]

    # Numerically stable softmax; exact divide for strict parity with the
    # PyTorch module (EUP approx reciprocal would add ~1e-3 rel error).
    s = s - jnp.max(s, axis=-1, keepdims=True)
    p = jnp.exp(s)
    p = p / jnp.sum(p, axis=-1, keepdims=True)
    # TODO(synk): nn.Dropout(att) is identity here (eval mode).

    # One P @ V for all heads/batches.
    yp = jnp.dot(p, vp, preferred_element_type=jnp.float32)   # (H*B*T, D)

    # Un-pack heads back into lanes: (H*B*T, D) -> (B*T, H*D).
    y = jnp.concatenate([yp[h * BT:(h + 1) * BT, :] for h in range(H)],
                        axis=1)

    # Single output projection.
    out = jnp.dot(y, wo_ref[...], preferred_element_type=jnp.float32) \
          + bo_ref[...]
    o_ref[...] = out.astype(o_ref.dtype)


def pack_params(params, *, num_heads, batch, seq):
    """One-time packing (NOT done per forward call):
       * fuse W_q/W_k/W_v into one (C, 3C) weight and (1, 3C) bias,
       * fold the 1/sqrt(head_size) attention scale into W_q / b_q,
       * precompute the block-diagonal causal additive mask for the
         head-packed (h, b, t) row ordering (analogue of the module's
         registered `mask` buffer).
    """
    C = params["wq"].shape[0]
    D = C // num_heads
    scale = 1.0 / math.sqrt(D)
    w_qkv = jnp.concatenate(
        [params["wq"] * scale, params["wk"], params["wv"]], axis=1)   # (C, 3C)
    b_qkv = jnp.concatenate(
        [params["bq"] * scale, params["bk"], params["bv"]], axis=1)   # (1, 3C)

    groups = num_heads * batch
    tril = np.tril(np.ones((seq, seq), dtype=np.float32))
    block_diag = np.kron(np.eye(groups, dtype=np.float32), tril)
    mask_bias = jnp.asarray(np.where(block_diag > 0.0, 0.0, -1e30),
                            dtype=jnp.float32)            # (H*B*T, H*B*T)

    return {"w_qkv": w_qkv, "b_qkv": b_qkv,
            "wo": params["wo"], "bo": params["bo"],
            "mask_bias": mask_bias}


def multi_head_attention(x, packed, *, num_heads):
    """x: (B, T, C) float32; packed: output of pack_params()."""
    B, T, C = x.shape
    D = C // num_heads
    BT = B * T
    HBT = num_heads * BT

    # Fold the batch into the row dimension: one kernel invocation, no
    # per-grid-step pipeline overhead.  The reshapes are metadata-only in XLA.
    x2d = x.reshape(BT, C)

    flops = (2 * BT * C * (3 * C)            # fused QKV projection
             + 4 * HBT * HBT * D             # scores + P@V
             + 2 * BT * C * C)               # output projection
    bytes_accessed = 4 * (x2d.size + packed["w_qkv"].size
                          + packed["b_qkv"].size + packed["wo"].size
                          + packed["bo"].size + packed["mask_bias"].size
                          + BT * C)
    cost = pl.CostEstimate(flops=flops, transcendentals=HBT * HBT,
                           bytes_accessed=bytes_accessed)

    kernel = functools.partial(mha_kernel, num_heads=num_heads, head_size=D)

    # No grid: whole arrays are placed in VMEM for the single invocation, so
    # the grid-invariant weight/bias/mask operands are single-buffered.
    out2d = pl.pallas_call(
        kernel,
        out_shape=jax.ShapeDtypeStruct((BT, C), x.dtype),
        cost_estimate=cost,
    )(x2d, packed["w_qkv"], packed["b_qkv"], packed["wo"], packed["bo"],
      packed["mask_bias"])

    return out2d.reshape(B, T, C)


def reference_mha(x, params, *, num_heads):
    """Pure-JAX reference mirroring the PyTorch forward (eval mode)."""
    B, T, C = x.shape
    D = C // num_heads
    q = x @ params["wq"] + params["bq"]
    k = x @ params["wk"] + params["bk"]
    v = x @ params["wv"] + params["bv"]
    q = q.reshape(B, T, num_heads, D).transpose(0, 2, 1, 3)
    k = k.reshape(B, T, num_heads, D).transpose(0, 2, 1, 3)
    v = v.reshape(B, T, num_heads, D).transpose(0, 2, 1, 3)
    att = (q @ k.transpose(0, 1, 3, 2)) / math.sqrt(D)
    mask = jnp.triu(jnp.ones((T, T), dtype=bool), k=1)
    att = jnp.where(mask[None, None], -jnp.inf, att)
    att = jax.nn.softmax(att, axis=-1)
    y = (att @ v).transpose(0, 2, 1, 3).reshape(B, T, C)
    return y @ params["wo"] + params["bo"]


def init_params(key, emb_dim):
    """Deterministic parameter init (Linear weights stored as (in, out))."""
    ks = jax.random.split(key, 8)
    s = 1.0 / math.sqrt(emb_dim)

    def w(k):   # (in, out)
        return jax.random.normal(k, (emb_dim, emb_dim), jnp.float32) * s

    def b(k):   # (1, out)
        return jax.random.normal(k, (1, emb_dim), jnp.float32) * s

    return {
        "wq": w(ks[0]), "bq": b(ks[1]),
        "wk": w(ks[2]), "bk": b(ks[3]),
        "wv": w(ks[4]), "bv": b(ks[5]),
        "wo": w(ks[6]), "bo": b(ks[7]),
    }


if __name__ == "__main__":
    # config: emb_dim=32, n_heads=4, context_length>=T, drop_rate ignored (eval)
    B, T, C, H = 2, 8, 32, 4

    key = jax.random.PRNGKey(0)
    kx, kp = jax.random.split(key)
    x = jax.random.normal(kx, (B, T, C), jnp.float32)
    params = init_params(kp, C)

    # One-time packing (analogue of building the module / registering buffers).
    packed = pack_params(params, num_heads=H, batch=B, seq=T)

    fwd = jax.jit(functools.partial(multi_head_attention, num_heads=H))
    out = jax.block_until_ready(fwd(x, packed))

    ref = reference_mha(x, params, num_heads=H)
    assert out.shape == (B, T, C)
    # Tolerance covers the worst case where XLA lowers the reference's f32
    # matmuls as reduced-precision MXU passes under default matmul precision;
    # observed error is typically far below this.
    assert jnp.allclose(out, ref, atol=2e-2, rtol=2e-2), "mismatch vs reference"

    print("KERNEL_OK")
</pallas_src>

<mosaic_0001>
module attributes {stable_mosaic.version = 11 : i64} {
  func.func @mha_kernel(%arg0: memref<16x32xf32, #tpu.memory_space<vmem>>, %arg1: memref<32x96xf32, #tpu.memory_space<vmem>>, %arg2: memref<1x96xf32, #tpu.memory_space<vmem>>, %arg3: memref<32x32xf32, #tpu.memory_space<vmem>>, %arg4: memref<1x32xf32, #tpu.memory_space<vmem>>, %arg5: memref<64x64xf32, #tpu.memory_space<vmem>>, %arg6: memref<16x32xf32, #tpu.memory_space<vmem>>) attributes {dimension_semantics = [], scalar_prefetch = 0 : i64, scratch_operands = 0 : i64, tpu.core_type = #tpu.core_type<tc>} {
    %c0 = arith.constant 0 : index
    %c0_0 = arith.constant 0 : index
    %0 = vector.load %arg0[%c0, %c0_0] : memref<16x32xf32, #tpu.memory_space<vmem>>, vector<16x32xf32>
    %c0_1 = arith.constant 0 : index
    %c0_2 = arith.constant 0 : index
    %1 = vector.load %arg1[%c0_1, %c0_2] : memref<32x96xf32, #tpu.memory_space<vmem>>, vector<32x96xf32>
    %cst = arith.constant dense<0.000000e+00> : vector<16x96xf32>
    %2 = tpu.matmul %0, %1, %cst {dimension_numbers = #tpu.dot_dimension_numbers<[1], [0], [0], [1], [0, 0, 1, 1], [], []>} : vector<16x32xf32>, vector<32x96xf32>, vector<16x96xf32> -> vector<16x96xf32>
    %c0_3 = arith.constant 0 : index
    %c0_4 = arith.constant 0 : index
    %3 = vector.load %arg2[%c0_3, %c0_4] : memref<1x96xf32, #tpu.memory_space<vmem>>, vector<1x96xf32>
    %4 = vector.broadcast %3 : vector<1x96xf32> to vector<16x96xf32>
    %5 = arith.addf %2, %4 : vector<16x96xf32>
    %6 = vector.extract_strided_slice %5 {offsets = [0, 0], sizes = [16, 32], strides = [1, 1]} : vector<16x96xf32> to vector<16x32xf32>
    %7 = vector.extract_strided_slice %5 {offsets = [0, 32], sizes = [16, 32], strides = [1, 1]} : vector<16x96xf32> to vector<16x32xf32>
    %8 = vector.extract_strided_slice %5 {offsets = [0, 64], sizes = [16, 32], strides = [1, 1]} : vector<16x96xf32> to vector<16x32xf32>
    %9 = vector.extract_strided_slice %6 {offsets = [0, 0], sizes = [16, 8], strides = [1, 1]} : vector<16x32xf32> to vector<16x8xf32>
    %10 = vector.extract_strided_slice %6 {offsets = [0, 8], sizes = [16, 8], strides = [1, 1]} : vector<16x32xf32> to vector<16x8xf32>
    %11 = vector.extract_strided_slice %6 {offsets = [0, 16], sizes = [16, 8], strides = [1, 1]} : vector<16x32xf32> to vector<16x8xf32>
    %12 = vector.extract_strided_slice %6 {offsets = [0, 24], sizes = [16, 8], strides = [1, 1]} : vector<16x32xf32> to vector<16x8xf32>
    %13 = tpu.concatenate %9, %10, %11, %12 in 0 : vector<16x8xf32>, vector<16x8xf32>, vector<16x8xf32>, vector<16x8xf32> -> vector<64x8xf32>
    %14 = vector.extract_strided_slice %7 {offsets = [0, 0], sizes = [16, 8], strides = [1, 1]} : vector<16x32xf32> to vector<16x8xf32>
    %15 = vector.extract_strided_slice %7 {offsets = [0, 8], sizes = [16, 8], strides = [1, 1]} : vector<16x32xf32> to vector<16x8xf32>
    %16 = vector.extract_strided_slice %7 {offsets = [0, 16], sizes = [16, 8], strides = [1, 1]} : vector<16x32xf32> to vector<16x8xf32>
    %17 = vector.extract_strided_slice %7 {offsets = [0, 24], sizes = [16, 8], strides = [1, 1]} : vector<16x32xf32> to vector<16x8xf32>
    %18 = tpu.concatenate %14, %15, %16, %17 in 0 : vector<16x8xf32>, vector<16x8xf32>, vector<16x8xf32>, vector<16x8xf32> -> vector<64x8xf32>
    %19 = vector.extract_strided_slice %8 {offsets = [0, 0], sizes = [16, 8], strides = [1, 1]} : vector<16x32xf32> to vector<16x8xf32>
    %20 = vector.extract_strided_slice %8 {offsets = [0, 8], sizes = [16, 8], strides = [1, 1]} : vector<16x32xf32> to vector<16x8xf32>
    %21 = vector.extract_strided_slice %8 {offsets = [0, 16], sizes = [16, 8], strides = [1, 1]} : vector<16x32xf32> to vector<16x8xf32>
    %22 = vector.extract_strided_slice %8 {offsets = [0, 24], sizes = [16, 8], strides = [1, 1]} : vector<16x32xf32> to vector<16x8xf32>
    %23 = tpu.concatenate %19, %20, %21, %22 in 0 : vector<16x8xf32>, vector<16x8xf32>, vector<16x8xf32>, vector<16x8xf32> -> vector<64x8xf32>
    %cst_5 = arith.constant dense<0.000000e+00> : vector<64x64xf32>
    %24 = tpu.matmul %13, %18, %cst_5 {dimension_numbers = #tpu.dot_dimension_numbers<[1], [1], [0], [0], [0, 0, 1, 0], [], []>} : vector<64x8xf32>, vector<64x8xf32>, vector<64x64xf32> -> vector<64x64xf32>
    %c0_6 = arith.constant 0 : index
    %c0_7 = arith.constant 0 : index
    %25 = vector.load %arg5[%c0_6, %c0_7] : memref<64x64xf32, #tpu.memory_space<vmem>>, vector<64x64xf32>
    %26 = arith.addf %24, %25 : vector<64x64xf32>
    %cst_8 = arith.constant dense<0xFF800000> : vector<64xf32>
    %27 = vector.multi_reduction <maximumf>, %26, %cst_8 [1] : vector<64x64xf32> to vector<64xf32>
    %28 = vector.shape_cast %27 : vector<64xf32> to vector<64x1xf32>
    %29 = vector.broadcast %28 : vector<64x1xf32> to vector<64x64xf32>
    %30 = arith.subf %26, %29 : vector<64x64xf32>
    %31 = math.exp %30 : vector<64x64xf32>
    %cst_9 = arith.constant dense<0.000000e+00> : vector<64xf32>
    %32 = vector.multi_reduction <add>, %31, %cst_9 [1] : vector<64x64xf32> to vector<64xf32>
    %33 = vector.shape_cast %32 : vector<64xf32> to vector<64x1xf32>
    %34 = vector.broadcast %33 : vector<64x1xf32> to vector<64x64xf32>
    %35 = arith.divf %31, %34 : vector<64x64xf32>
    %cst_10 = arith.constant dense<0.000000e+00> : vector<64x8xf32>
    %36 = tpu.matmul %35, %23, %cst_10 {dimension_numbers = #tpu.dot_dimension_numbers<[1], [0], [0], [1], [0, 0, 1, 1], [], []>} : vector<64x64xf32>, vector<64x8xf32>, vector<64x8xf32> -> vector<64x8xf32>
    %37 = vector.extract_strided_slice %36 {offsets = [0, 0], sizes = [16, 8], strides = [1, 1]} : vector<64x8xf32> to vector<16x8xf32>
    %38 = vector.extract_strided_slice %36 {offsets = [16, 0], sizes = [16, 8], strides = [1, 1]} : vector<64x8xf32> to vector<16x8xf32>
    %39 = vector.extract_strided_slice %36 {offsets = [32, 0], sizes = [16, 8], strides = [1, 1]} : vector<64x8xf32> to vector<16x8xf32>
    %40 = vector.extract_strided_slice %36 {offsets = [48, 0], sizes = [16, 8], strides = [1, 1]} : vector<64x8xf32> to vector<16x8xf32>
    %41 = tpu.concatenate %37, %38, %39, %40 in 1 : vector<16x8xf32>, vector<16x8xf32>, vector<16x8xf32>, vector<16x8xf32> -> vector<16x32xf32>
    %c0_11 = arith.constant 0 : index
    %c0_12 = arith.constant 0 : index
    %42 = vector.load %arg3[%c0_11, %c0_12] : memref<32x32xf32, #tpu.memory_space<vmem>>, vector<32x32xf32>
    %cst_13 = arith.constant dense<0.000000e+00> : vector<16x32xf32>
    %43 = tpu.matmul %41, %42, %cst_13 {dimension_numbers = #tpu.dot_dimension_numbers<[1], [0], [0], [1], [0, 0, 1, 1], [], []>} : vector<16x32xf32>, vector<32x32xf32>, vector<16x32xf32> -> vector<16x32xf32>
    %c0_14 = arith.constant 0 : index
    %c0_15 = arith.constant 0 : index
    %44 = vector.load %arg4[%c0_14, %c0_15] : memref<1x32xf32, #tpu.memory_space<vmem>>, vector<1x32xf32>
    %45 = vector.broadcast %44 : vector<1x32xf32> to vector<16x32xf32>
    %46 = arith.addf %43, %45 : vector<16x32xf32>
    %c0_16 = arith.constant 0 : index
    %c0_17 = arith.constant 0 : index
    %47 = vector.load %arg6[%c0_16, %c0_17] : memref<16x32xf32, #tpu.memory_space<vmem>>, vector<16x32xf32>
    tpu.vector_store %arg6[%c0_16, %c0_17], %46 {strides = array<i32>} : memref<16x32xf32, #tpu.memory_space<vmem>>, vector<16x32xf32>,
    return
  }
}

</mosaic_0001>

<llo_original>
// kernel: multi_head_attention.1
$region0: #{multi_head_attention.1}
  #allocation0 [shape = 'u32[]', space=smem, size = 0x4, offset = 0x4, fixed_abs, tag = 'smem constant byte address 0x4 - core index']
  #allocation1 [shape = 'u32[144,128]{1,0:T(1,128)}', space=vmem, size = 0x12000, scoped, tag = 'internal scratch']
  %s0 = inlined_call_operand.hbm [shape: f32[16,32], index: 0, kind: input, shape index: {}]
  %s1 = inlined_call_operand.hbm [shape: f32[32,96], index: 1, kind: input, shape index: {}]
  %s2 = inlined_call_operand.vmem [shape: f32[1,96], index: 2, kind: input, shape index: {}]
  %s3 = inlined_call_operand.hbm [shape: f32[32,32], index: 3, kind: input, shape index: {}]
  %s4 = inlined_call_operand.vmem [shape: f32[1,32], index: 4, kind: input, shape index: {}]
  %s5 = inlined_call_operand.hbm [shape: f32[64,64], index: 5, kind: input, shape index: {}]
  %s6 = inlined_call_operand.hbm [shape: f32[16,32], index: 6, kind: output, shape index: {}]
  %s7 = sld [smem:[#allocation0]]
  $region50: #{multi_head_attention.1} parent=0
    _
  %s9 = ssub.s32 1, %s7
  %s10 = scalar_select 0, %s9, %s7
  $region1: #{multi_head_attention.1} parent=0
    #allocation2 [shape = 'u8[8192]{0}', space=vmem, size = 0x2000, scoped, tag = 'input window, operand 0, single buffered']
    #allocation3 [shape = 's32[1]{0}', space=sflag, size = 0x4, scoped, tag = 'scoped memory for multi_head_attention.1']
    #allocation4 [shape = 's32[1]{0}', space=sflag, size = 0x4, scoped, tag = 'scoped memory for multi_head_attention.1']
    #allocation5 [shape = 'u8[16384]{0}', space=vmem, size = 0x4000, scoped, tag = 'input window, operand 1, single buffered']
    #allocation6 [shape = 's32[1]{0}', space=sflag, size = 0x4, scoped, tag = 'scoped memory for multi_head_attention.1']
    #allocation7 [shape = 'u8[16384]{0}', space=vmem, size = 0x4000, scoped, tag = 'input window, operand 3, single buffered']
    #allocation8 [shape = 'u8[32768]{0}', space=vmem, size = 0x8000, scoped, tag = 'input window, operand 5, single buffered']
    #allocation9 [shape = 's32[1]{0}', space=sflag, size = 0x4, scoped, tag = 'scoped memory for multi_head_attention.1']
    #allocation10 [shape = 'u8[8192]{0}', space=vmem, size = 0x2000, scoped, tag = 'output window, operand 0, single buffered']
    %11 = vsyncpa [#allocation3], 0
    %12 = vsyncpa [#allocation6], 0
    %13 = vsyncpa [#allocation9], 0
    %14 = vsyncpa [#allocation4], 0
    // Predicated region
    $region2: #{multi_head_attention.1} parent=1 // pred_check
      _
    $region3: #{multi_head_attention.1} parent=1 // pred_check_branch
      %16 = sbr.rel (0) target = $region5
    $region4: #{multi_head_attention.1} parent=1 // pred_region
      %s18 = ssub.s32 256, 256
      %19 = vsyncadd [#allocation3], %s18
      %s20 = sshll.u32 [#allocation2], 4
      %s21 = int_to_ptr.vmem [resolvable:$true] %s20
      %26 = dma.hbm_to_vmem [thread:$0]  %s0, 256, %s21, [#allocation3], 128, 128, 8
    $region5: #{multi_head_attention.1} parent=1 // pred_fallthru
      _
    // Predicated region
    $region6: #{multi_head_attention.1} parent=1 // pred_check
      _
    $region7: #{multi_head_attention.1} parent=1 // pred_check_branch
      %28 = sbr.rel (0) target = $region9
    $region8: #{multi_head_attention.1} parent=1 // pred_region
      %s30 = ssub.s32 512, 512
      %31 = vsyncadd [#allocation6], %s30
      %s32 = sshll.u32 [#allocation5], 4
      %s33 = int_to_ptr.vmem [resolvable:$true] %s32
      %38 = dma.hbm_to_vmem [thread:$0]  %s1, 512, %s33, [#allocation6], 128, 128, 8
    $region9: #{multi_head_attention.1} parent=1 // pred_fallthru
      _
    // Predicated region
    $region10: #{multi_head_attention.1} parent=1 // pred_check
      _
    $region11: #{multi_head_attention.1} parent=1 // pred_check_branch
      %40 = sbr.rel (0) target = $region13
    $region12: #{multi_head_attention.1} parent=1 // pred_region
      _
    $region13: #{multi_head_attention.1} parent=1 // pred_fallthru
      _
    // Predicated region
    $region14: #{multi_head_attention.1} parent=1 // pred_check
      _
    $region15: #{multi_head_attention.1} parent=1 // pred_check_branch
      %42 = sbr.rel (0) target = $region17
    $region16: #{multi_head_attention.1} parent=1 // pred_region
      %s44 = ssub.s32 512, 512
      %45 = vsyncadd [#allocation6], %s44
      %s46 = sshll.u32 [#allocation7], 4
      %s47 = int_to_ptr.vmem [resolvable:$true] %s46
      %52 = dma.hbm_to_vmem [thread:$0]  %s3, 512, %s47, [#allocation6], 128, 128, 8
    $region17: #{multi_head_attention.1} parent=1 // pred_fallthru
      _
    // Predicated region
    $region18: #{multi_head_attention.1} parent=1 // pred_check
      _
    $region19: #{multi_head_attention.1} parent=1 // pred_check_branch
      %54 = sbr.rel (0) target = $region21
    $region20: #{multi_head_attention.1} parent=1 // pred_region
      _
    $region21: #{multi_head_attention.1} parent=1 // pred_fallthru
      _
    // Predicated region
    $region22: #{multi_head_attention.1} parent=1 // pred_check
      _
    $region23: #{multi_head_attention.1} parent=1 // pred_check_branch
      %56 = sbr.rel (0) target = $region25
    $region24: #{multi_head_attention.1} parent=1 // pred_region
      %s58 = ssub.s32 1024, 1024
      %59 = vsyncadd [#allocation9], %s58
      %s60 = sshll.u32 [#allocation8], 4
      %s61 = int_to_ptr.vmem [resolvable:$true] %s60
      %66 = dma.hbm_to_vmem [thread:$0]  %s5, 1024, %s61, [#allocation9], 128, 128, 8
    $region25: #{multi_head_attention.1} parent=1 // pred_fallthru
      _
    // Predicated region
    $region26: #{multi_head_attention.1} parent=1 // pred_check
      _
    $region27: #{multi_head_attention.1} parent=1 // pred_check_branch
      %68 = sbr.rel (0) target = $region29
    $region28: #{multi_head_attention.1} parent=1 // pred_region
      %69 = dma.done [#allocation3], 256
    $region29: #{multi_head_attention.1} parent=1 // pred_fallthru
      _
    // Predicated region
    $region30: #{multi_head_attention.1} parent=1 // pred_check
      _
    $region31: #{multi_head_attention.1} parent=1 // pred_check_branch
      %71 = sbr.rel (0) target = $region33
    $region32: #{multi_head_attention.1} parent=1 // pred_region
      %72 = dma.done [#allocation6], 512
    $region33: #{multi_head_attention.1} parent=1 // pred_fallthru
      _
    // Predicated region
    $region34: #{multi_head_attention.1} parent=1 // pred_check
      _
    $region35: #{multi_head_attention.1} parent=1 // pred_check_branch
      %74 = sbr.rel (0) target = $region37
    $region36: #{multi_head_attention.1} parent=1 // pred_region
      %75 = dma.done [#allocation6], 512
    $region37: #{multi_head_attention.1} parent=1 // pred_fallthru
      _
    // Predicated region
    $region38: #{multi_head_attention.1} parent=1 // pred_check
      _
    $region39: #{multi_head_attention.1} parent=1 // pred_check_branch
      %77 = sbr.rel (0) target = $region41
    $region40: #{multi_head_attention.1} parent=1 // pred_region
      %78 = dma.done [#allocation9], 1024
    $region41: #{multi_head_attention.1} parent=1 // pred_fallthru
      _
    %v79 = vld [vmem:[#allocation2] sm:$0xff]
    %v80 = vld [vmem:[#allocation2 + $0x8] sm:$0xff]
    %v81 = vld [vmem:[#allocation5] sm:$0xff]
    %v82 = vld [vmem:[#allocation5 + $0x8] sm:$0xff]
    %v83 = vld [vmem:[#allocation5 + $0x10] sm:$0xff]
    %v84 = vld [vmem:[#allocation5 + $0x18] sm:$0xff]
    %v85 = vld [vmem:[%s2] sm:$0x1]
    %v87 = vlaneseq
    %v88 = vshrl.u32 %v87, 7
    %v89 = vsub.s32 0, %v88
    %v90 = vrot.slane %v85, %v89
    %vm92 = vcmask 261120
    %v94 = vsel %vm92, %v79, 0
    %v97 = vsel %vm92, %v80, 0
    %99 = vmatprep.subr.mxu0 0.0
    %100 = vmatpush1.msra.mxu0 0.0
    %101 = vmatprep.subr.mxu0 0.0
    %102 = vmatpush1.msra.mxu0 0.0
    %103 = vmatprep.subr.mxu0 0.0
    %104 = vmatpush1.msra.mxu0 0.0
    %105 = vmatprep.subr.mxu0 0.0
    %106 = vmatpush1.msra.mxu0 0.0
    %107 = vmatprep.subr.mxu0 0.0
    %108 = vmatpush1.msra.mxu0 0.0
    %109 = vmatprep.subr.mxu0 0.0
    %110 = vmatpush1.msra.mxu0 0.0
    %111 = vmatprep.subr.mxu0 0.0
    %112 = vmatpush1.msra.mxu0 0.0
    %113 = vmatprep.subr.mxu0 0.0
    %114 = vmatpush1.msra.mxu0 0.0
    %115 = vmatprep.subr.mxu0 0.0
    %116 = vmatpush1.msra.mxu0 0.0
    %117 = vmatprep.subr.mxu0 0.0
    %118 = vmatpush1.msra.mxu0 0.0
    %119 = vmatprep.subr.mxu0 0.0
    %120 = vmatpush1.msra.mxu0 0.0
    %121 = vmatprep.subr.mxu0 0.0
    %122 = vmatpush1.msra.mxu0 0.0
    %123 = vmatprep.subr.mxu0 0.0
    %124 = vmatpush1.msra.mxu0 %v84
    %125 = vmatprep.subr.mxu0 0.0
    %126 = vmatpush1.msra.mxu0 %v83
    %127 = vmatprep.subr.mxu0 0.0
    %128 = vmatpush1.msra.mxu0 %v82
    %129 = vmatprep.subr.mxu0 0.0
    %130 = vmatpush1.msra.mxu0 %v81
    %131 = vmatprep.subr.mxu0 0.0
    %132 = vmatpush2.msra.mxu0 0.0
    %133 = vmatprep.subr.mxu0 0.0
    %134 = vmatpush2.msra.mxu0 0.0
    %135 = vmatprep.subr.mxu0 0.0
    %136 = vmatpush2.msra.mxu0 0.0
    %137 = vmatprep.subr.mxu0 0.0
    %138 = vmatpush2.msra.mxu0 0.0
    %139 = vmatprep.subr.mxu0 0.0
    %140 = vmatpush2.msra.mxu0 0.0
    %141 = vmatprep.subr.mxu0 0.0
    %142 = vmatpush2.msra.mxu0 0.0
    %143 = vmatprep.subr.mxu0 0.0
    %144 = vmatpush2.msra.mxu0 0.0
    %145 = vmatprep.subr.mxu0 0.0
    %146 = vmatpush2.msra.mxu0 0.0
    %147 = vmatprep.subr.mxu0 0.0
    %148 = vmatpush2.msra.mxu0 0.0
    %149 = vmatprep.subr.mxu0 0.0
    %150 = vmatpush2.msra.mxu0 0.0
    %151 = vmatprep.subr.mxu0 0.0
    %152 = vmatpush2.msra.mxu0 0.0
    %153 = vmatprep.subr.mxu0 0.0
    %154 = vmatpush2.msra.mxu0 0.0
    %155 = vmatprep.subr.mxu0 0.0
    %156 = vmatpush2.msra.mxu0 0.0
    %157 = vmatprep.subr.mxu0 0.0
    %158 = vmatpush2.msra.mxu0 0.0
    %159 = vmatprep.subr.mxu0 0.0
    %160 = vmatpush2.msra.mxu0 0.0
    %161 = vmatprep.subr.mxu0 0.0
    %162 = vmatpush2.msra.mxu0 0.0
    %163 = vmatprep.mubr.f32.mxu0 0.0
    %164 = vmatmul.mubr.f32.gmra.mxu0 %v94
    %v165 = vpop.f32.mrf.mxu0
    %v166 = vadd.f32 %v90, %v165
    %v167 = vpop.f32.mrf.mxu0
    %168 = vmatprep.mubr.f32.mxu0 0.0
    %169 = vmatmul.mubr.f32.gmra.mxu0 %v97
    %v170 = vpop.f32.mrf.mxu0
    %v171 = vadd.f32 %v90, %v170
    %v172 = vpop.f32.mrf.mxu0
    %173 = vdwg.mxu0
    %176 = vrot.lane.b32.xlu0 %v166, 120
    %v177 = vpop.permute.xlu0 %176
    %178 = vrot.lane.b32.xlu0 %v171, 120
    %v179 = vpop.permute.xlu0 %178
    %180 = vrot.lane.b32.xlu0 %v166, 112
    %v181 = vpop.permute.xlu0 %180
    %182 = vrot.lane.b32.xlu0 %v171, 112
    %v183 = vpop.permute.xlu0 %182
    %184 = vrot.lane.b32.xlu0 %v166, 104
    %v185 = vpop.permute.xlu0 %184
    %186 = vrot.lane.b32.xlu0 %v171, 104
    %v187 = vpop.permute.xlu0 %186
    %v188 = vld [vmem:[#allocation8] sm:$0xff]
    %v189 = vld [vmem:[#allocation8 + $0x8] sm:$0xff]
    %v190 = vld [vmem:[#allocation8 + $0x10] sm:$0xff]
    %v191 = vld [vmem:[#allocation8 + $0x18] sm:$0xff]
    %v192 = vld [vmem:[#allocation8 + $0x20] sm:$0xff]
    %v193 = vld [vmem:[#allocation8 + $0x28] sm:$0xff]
    %v194 = vld [vmem:[#allocation8 + $0x30] sm:$0xff]
    %v195 = vld [vmem:[#allocation8 + $0x38] sm:$0xff]
    %196 = vrot.lane.b32.xlu0 %v166, 96
    %v197 = vpop.permute.xlu0 %196
    %198 = vrot.lane.b32.xlu0 %v171, 96
    %v199 = vpop.permute.xlu0 %198
    %200 = vrot.lane.b32.xlu0 %v177, 96
    %v201 = vpop.permute.xlu0 %200
    %202 = vrot.lane.b32.xlu0 %v179, 96
    %v203 = vpop.permute.xlu0 %202
    %204 = vrot.lane.b32.xlu0 %v181, 96
    %v205 = vpop.permute.xlu0 %204
    %206 = vrot.lane.b32.xlu0 %v183, 96
    %v207 = vpop.permute.xlu0 %206
    %208 = vrot.lane.b32.xlu0 %v185, 96
    %v209 = vpop.permute.xlu0 %208
    %210 = vrot.lane.b32.xlu0 %v187, 96
    %v211 = vpop.permute.xlu0 %210
    %vm212 = vcmask 64512
    %v213 = vsel %vm212, %v166, 0
    %v215 = vsel %vm212, %v171, 0
    %v217 = vsel %vm212, %v177, 0
    %v219 = vsel %vm212, %v179, 0
    %v221 = vsel %vm212, %v181, 0
    %v223 = vsel %vm212, %v183, 0
    %v225 = vsel %vm212, %v185, 0
    %v227 = vsel %vm212, %v187, 0
    %v229 = vsel %vm212, %v197, 0
    %v231 = vsel %vm212, %v199, 0
    %v233 = vsel %vm212, %v201, 0
    %v235 = vsel %vm212, %v203, 0
    %v237 = vsel %vm212, %v205, 0
    %v239 = vsel %vm212, %v207, 0
    %v241 = vsel %vm212, %v209, 0
    %v243 = vsel %vm212, %v211, 0
    %245 = vmatprep.subr.mxu0 0.0
    %246 = vmatpush1.xpose.msra.mxu0 0.0
    %247 = vmatprep.subr.mxu0 0.0
    %248 = vmatpush1.xpose.msra.mxu0 0.0
    %249 = vmatprep.subr.mxu0 0.0
    %250 = vmatpush1.xpose.msra.mxu0 0.0
    %251 = vmatprep.subr.mxu0 0.0
    %252 = vmatpush1.xpose.msra.mxu0 0.0
    %253 = vmatprep.subr.mxu0 0.0
    %254 = vmatpush1.xpose.msra.mxu0 0.0
    %255 = vmatprep.subr.mxu0 0.0
    %256 = vmatpush1.xpose.msra.mxu0 0.0
    %257 = vmatprep.subr.mxu0 0.0
    %258 = vmatpush1.xpose.msra.mxu0 0.0
    %259 = vmatprep.subr.mxu0 0.0
    %260 = vmatpush1.xpose.msra.mxu0 0.0
    %261 = vmatprep.subr.mxu0 0.0
    %262 = vmatpush1.xpose.msra.mxu0 %v243
    %263 = vmatprep.subr.mxu0 0.0
    %264 = vmatpush1.xpose.msra.mxu0 %v241
    %265 = vmatprep.subr.mxu0 0.0
    %266 = vmatpush1.xpose.msra.mxu0 %v239
    %267 = vmatprep.subr.mxu0 0.0
    %268 = vmatpush1.xpose.msra.mxu0 %v237
    %269 = vmatprep.subr.mxu0 0.0
    %270 = vmatpush1.xpose.msra.mxu0 %v235
    %271 = vmatprep.subr.mxu0 0.0
    %272 = vmatpush1.xpose.msra.mxu0 %v233
    %273 = vmatprep.subr.mxu0 0.0
    %274 = vmatpush1.xpose.msra.mxu0 %v231
    %275 = vmatprep.subr.mxu0 0.0
    %276 = vmatpush1.xpose.msra.mxu0 %v229
    %277 = vmatprep.subr.mxu0 0.0
    %278 = vmatpush2.xpose.msra.mxu0 0.0
    %279 = vmatprep.subr.mxu0 0.0
    %280 = vmatpush2.xpose.msra.mxu0 0.0
    %281 = vmatprep.subr.mxu0 0.0
    %282 = vmatpush2.xpose.msra.mxu0 0.0
    %283 = vmatprep.subr.mxu0 0.0
    %284 = vmatpush2.xpose.msra.mxu0 0.0
    %285 = vmatprep.subr.mxu0 0.0
    %286 = vmatpush2.xpose.msra.mxu0 0.0
    %287 = vmatprep.subr.mxu0 0.0
    %288 = vmatpush2.xpose.msra.mxu0 0.0
    %289 = vmatprep.subr.mxu0 0.0
    %290 = vmatpush2.xpose.msra.mxu0 0.0
    %291 = vmatprep.subr.mxu0 0.0
    %292 = vmatpush2.xpose.msra.mxu0 0.0
    %293 = vmatprep.subr.mxu0 0.0
    %294 = vmatpush2.xpose.msra.mxu0 0.0
    %295 = vmatprep.subr.mxu0 0.0
    %296 = vmatpush2.xpose.msra.mxu0 0.0
    %297 = vmatprep.subr.mxu0 0.0
    %298 = vmatpush2.xpose.msra.mxu0 0.0
    %299 = vmatprep.subr.mxu0 0.0
    %300 = vmatpush2.xpose.msra.mxu0 0.0
    %301 = vmatprep.subr.mxu0 0.0
    %302 = vmatpush2.xpose.msra.mxu0 0.0
    %303 = vmatprep.subr.mxu0 0.0
    %304 = vmatpush2.xpose.msra.mxu0 0.0
    %305 = vmatprep.subr.mxu0 0.0
    %306 = vmatpush2.xpose.msra.mxu0 0.0
    %307 = vmatprep.subr.mxu0 0.0
    %308 = vmatpush2.xpose.msra.mxu0 0.0
    %309 = vmatprep.mubr.f32.mxu0 0.0
    %310 = vmatmul.mubr.f32.gmra.mxu0 %v213
    %v311 = vpop.f32.mrf.mxu0
    %v312 = vadd.f32 %v188, %v311
    %v313 = vpop.f32.mrf.mxu0
    %314 = vmatprep.mubr.f32.mxu0 0.0
    %315 = vmatmul.mubr.f32.gmra.mxu0 %v215
    %v316 = vpop.f32.mrf.mxu0
    %v317 = vadd.f32 %v189, %v316
    %v318 = vpop.f32.mrf.mxu0
    %319 = vmatprep.mubr.f32.mxu0 0.0
    %320 = vmatmul.mubr.f32.gmra.mxu0 %v217
    %v321 = vpop.f32.mrf.mxu0
    %v322 = vadd.f32 %v190, %v321
    %v323 = vpop.f32.mrf.mxu0
    %324 = vmatprep.mubr.f32.mxu0 0.0
    %325 = vmatmul.mubr.f32.gmra.mxu0 %v219
    %v326 = vpop.f32.mrf.mxu0
    %v327 = vadd.f32 %v191, %v326
    %v328 = vpop.f32.mrf.mxu0
    %329 = vmatprep.mubr.f32.mxu0 0.0
    %330 = vmatmul.mubr.f32.gmra.mxu0 %v221
    %v331 = vpop.f32.mrf.mxu0
    %v332 = vadd.f32 %v192, %v331
    %v333 = vpop.f32.mrf.mxu0
    %334 = vmatprep.mubr.f32.mxu0 0.0
    %335 = vmatmul.mubr.f32.gmra.mxu0 %v223
    %v336 = vpop.f32.mrf.mxu0
    %v337 = vadd.f32 %v193, %v336
    %v338 = vpop.f32.mrf.mxu0
    %339 = vmatprep.mubr.f32.mxu0 0.0
    %340 = vmatmul.mubr.f32.gmra.mxu0 %v225
    %v341 = vpop.f32.mrf.mxu0
    %v342 = vadd.f32 %v194, %v341
    %v343 = vpop.f32.mrf.mxu0
    %344 = vmatprep.mubr.f32.mxu0 0.0
    %345 = vmatmul.mubr.f32.gmra.mxu0 %v227
    %v346 = vpop.f32.mrf.mxu0
    %v347 = vadd.f32 %v195, %v346
    %v348 = vpop.f32.mrf.mxu0
    %349 = vdwg.mxu0
    %vm350 = vcmask 523264
    %v351 = vsel %vm350, %v312, -inf
    %352 = vmax.xlane.f32.xlu0 %v351
    %v353 = vpop.xlane.xlu0 %352
    %v354 = vsel %vm350, %v317, -inf
    %355 = vmax.xlane.f32.xlu0 %v354
    %v356 = vpop.xlane.xlu0 %355
    %v357 = vsel %vm350, %v322, -inf
    %358 = vmax.xlane.f32.xlu0 %v357
    %v359 = vpop.xlane.xlu0 %358
    %v360 = vsel %vm350, %v327, -inf
    %361 = vmax.xlane.f32.xlu0 %v360
    %v362 = vpop.xlane.xlu0 %361
    %v363 = vsel %vm350, %v332, -inf
    %364 = vmax.xlane.f32.xlu0 %v363
    %v365 = vpop.xlane.xlu0 %364
    %v366 = vsel %vm350, %v337, -inf
    %367 = vmax.xlane.f32.xlu0 %v366
    %v368 = vpop.xlane.xlu0 %367
    %v369 = vsel %vm350, %v342, -inf
    %370 = vmax.xlane.f32.xlu0 %v369
    %v371 = vpop.xlane.xlu0 %370
    %v372 = vsel %vm350, %v347, -inf
    %373 = vmax.xlane.f32.xlu0 %v372
    %v374 = vpop.xlane.xlu0 %373
    %v375 = vsub.f32 %v312, %v353
    %v376 = vsub.f32 %v317, %v356
    %v377 = vsub.f32 %v322, %v359
    %v378 = vsub.f32 %v327, %v362
    %v379 = vsub.f32 %v332, %v365
    %v380 = vsub.f32 %v337, %v368
    %v381 = vsub.f32 %v342, %v371
    %v382 = vsub.f32 %v347, %v374
    %v383 = vmul.f32 %v375, 1.442695
    %v384 = vpow.pop %v383
    %v385 = vmul.f32 %v376, 1.442695
    %v386 = vpow.pop %v385
    %v387 = vmul.f32 %v377, 1.442695
    %v388 = vpow.pop %v387
    %v389 = vmul.f32 %v378, 1.442695
    %v390 = vpow.pop %v389
    %v391 = vmul.f32 %v379, 1.442695
    %v392 = vpow.pop %v391
    %v393 = vmul.f32 %v380, 1.442695
    %v394 = vpow.pop %v393
    %v395 = vmul.f32 %v381, 1.442695
    %v396 = vpow.pop %v395
    %v397 = vmul.f32 %v382, 1.442695
    %v398 = vpow.pop %v397
    %v399 = vsel %vm350, %v384, 0.0
    %400 = vadd.xlane.f32.xlu0 %v399
    %v401 = vpop.xlane.xlu0 %400
    %v402 = vsel %vm350, %v386, 0.0
    %403 = vadd.xlane.f32.xlu0 %v402
    %v404 = vpop.xlane.xlu0 %403
    %v405 = vsel %vm350, %v388, 0.0
    %406 = vadd.xlane.f32.xlu0 %v405
    %v407 = vpop.xlane.xlu0 %406
    %v408 = vsel %vm350, %v390, 0.0
    %409 = vadd.xlane.f32.xlu0 %v408
    %v410 = vpop.xlane.xlu0 %409
    %v411 = vsel %vm350, %v392, 0.0
    %412 = vadd.xlane.f32.xlu0 %v411
    %v413 = vpop.xlane.xlu0 %412
    %v414 = vsel %vm350, %v394, 0.0
    %415 = vadd.xlane.f32.xlu0 %v414
    %v416 = vpop.xlane.xlu0 %415
    %v417 = vsel %vm350, %v396, 0.0
    %418 = vadd.xlane.f32.xlu0 %v417
    %v419 = vpop.xlane.xlu0 %418
    %v420 = vsel %vm350, %v398, 0.0
    %421 = vadd.xlane.f32.xlu0 %v420
    %v422 = vpop.xlane.xlu0 %421
    %v423 = vrcp.pop %v401
    %v424 = vmul.f32 %v384, %v423
    %v425 = vrcp.pop %v404
    %v426 = vmul.f32 %v386, %v425
    %v427 = vrcp.pop %v407
    %v428 = vmul.f32 %v388, %v427
    %v429 = vrcp.pop %v410
    %v430 = vmul.f32 %v390, %v429
    %v431 = vrcp.pop %v413
    %v432 = vmul.f32 %v392, %v431
    %v433 = vrcp.pop %v416
    %v434 = vmul.f32 %v394, %v433
    %v435 = vrcp.pop %v419
    %v436 = vmul.f32 %v396, %v435
    %v437 = vrcp.pop %v422
    %v438 = vmul.f32 %v398, %v437
    %439 = vrot.lane.b32.xlu0 %v166, 64
    %v440 = vpop.permute.xlu0 %439
    %441 = vrot.lane.b32.xlu0 %v171, 64
    %v442 = vpop.permute.xlu0 %441
    %443 = vrot.lane.b32.xlu0 %v177, 64
    %v444 = vpop.permute.xlu0 %443
    %445 = vrot.lane.b32.xlu0 %v179, 64
    %v446 = vpop.permute.xlu0 %445
    %447 = vrot.lane.b32.xlu0 %v181, 64
    %v448 = vpop.permute.xlu0 %447
    %449 = vrot.lane.b32.xlu0 %v183, 64
    %v450 = vpop.permute.xlu0 %449
    %451 = vrot.lane.b32.xlu0 %v185, 64
    %v452 = vpop.permute.xlu0 %451
    %453 = vrot.lane.b32.xlu0 %v187, 64
    %v454 = vpop.permute.xlu0 %453
    %v464 = vsel %vm350, %v424, 0
    %v467 = vsel %vm350, %v426, 0
    %v470 = vsel %vm350, %v428, 0
    %v473 = vsel %vm350, %v430, 0
    %v476 = vsel %vm350, %v432, 0
    %v479 = vsel %vm350, %v434, 0
    %v482 = vsel %vm350, %v436, 0
    %v485 = vsel %vm350, %v438, 0
    %487 = vmatprep.subr.mxu0 0.0
    %488 = vmatpush1.msra.mxu0 0.0
    %489 = vmatprep.subr.mxu0 0.0
    %490 = vmatpush1.msra.mxu0 0.0
    %491 = vmatprep.subr.mxu0 0.0
    %492 = vmatpush1.msra.mxu0 0.0
    %493 = vmatprep.subr.mxu0 0.0
    %494 = vmatpush1.msra.mxu0 0.0
    %495 = vmatprep.subr.mxu0 0.0
    %496 = vmatpush1.msra.mxu0 0.0
    %497 = vmatprep.subr.mxu0 0.0
    %498 = vmatpush1.msra.mxu0 0.0
    %499 = vmatprep.subr.mxu0 0.0
    %500 = vmatpush1.msra.mxu0 0.0
    %501 = vmatprep.subr.mxu0 0.0
    %502 = vmatpush1.msra.mxu0 0.0
    %503 = vmatprep.subr.mxu0 0.0
    %504 = vmatpush1.msra.mxu0 %v454
    %505 = vmatprep.subr.mxu0 0.0
    %506 = vmatpush1.msra.mxu0 %v452
    %507 = vmatprep.subr.mxu0 0.0
    %508 = vmatpush1.msra.mxu0 %v450
    %509 = vmatprep.subr.mxu0 0.0
    %510 = vmatpush1.msra.mxu0 %v448
    %511 = vmatprep.subr.mxu0 0.0
    %512 = vmatpush1.msra.mxu0 %v446
    %513 = vmatprep.subr.mxu0 0.0
    %514 = vmatpush1.msra.mxu0 %v444
    %515 = vmatprep.subr.mxu0 0.0
    %516 = vmatpush1.msra.mxu0 %v442
    %517 = vmatprep.subr.mxu0 0.0
    %518 = vmatpush1.msra.mxu0 %v440
    %519 = vmatprep.subr.mxu0 0.0
    %520 = vmatpush2.msra.mxu0 0.0
    %521 = vmatprep.subr.mxu0 0.0
    %522 = vmatpush2.msra.mxu0 0.0
    %523 = vmatprep.subr.mxu0 0.0
    %524 = vmatpush2.msra.mxu0 0.0
    %525 = vmatprep.subr.mxu0 0.0
    %526 = vmatpush2.msra.mxu0 0.0
    %527 = vmatprep.subr.mxu0 0.0
    %528 = vmatpush2.msra.mxu0 0.0
    %529 = vmatprep.subr.mxu0 0.0
    %530 = vmatpush2.msra.mxu0 0.0
    %531 = vmatprep.subr.mxu0 0.0
    %532 = vmatpush2.msra.mxu0 0.0
    %533 = vmatprep.subr.mxu0 0.0
    %534 = vmatpush2.msra.mxu0 0.0
    %535 = vmatprep.subr.mxu0 0.0
    %536 = vmatpush2.msra.mxu0 0.0
    %537 = vmatprep.subr.mxu0 0.0
    %538 = vmatpush2.msra.mxu0 0.0
    %539 = vmatprep.subr.mxu0 0.0
    %540 = vmatpush2.msra.mxu0 0.0
    %541 = vmatprep.subr.mxu0 0.0
    %542 = vmatpush2.msra.mxu0 0.0
    %543 = vmatprep.subr.mxu0 0.0
    %544 = vmatpush2.msra.mxu0 0.0
    %545 = vmatprep.subr.mxu0 0.0
    %546 = vmatpush2.msra.mxu0 0.0
    %547 = vmatprep.subr.mxu0 0.0
    %548 = vmatpush2.msra.mxu0 0.0
    %549 = vmatprep.subr.mxu0 0.0
    %550 = vmatpush2.msra.mxu0 0.0
    %551 = vmatprep.mubr.f32.mxu0 0.0
    %552 = vmatmul.mubr.f32.gmra.mxu0 %v464
    %v553 = vpop.f32.mrf.mxu0
    %v554 = vadd.f32 0.0, %v553
    %v555 = vpop.f32.mrf.mxu0
    %556 = vmatprep.mubr.f32.mxu0 0.0
    %557 = vmatmul.mubr.f32.gmra.mxu0 %v467
    %v558 = vpop.f32.mrf.mxu0
    %v559 = vadd.f32 0.0, %v558
    %v560 = vpop.f32.mrf.mxu0
    %561 = vmatprep.mubr.f32.mxu0 0.0
    %562 = vmatmul.mubr.f32.gmra.mxu0 %v470
    %v563 = vpop.f32.mrf.mxu0
    %v564 = vadd.f32 0.0, %v563
    %v565 = vpop.f32.mrf.mxu0
    %566 = vmatprep.mubr.f32.mxu0 0.0
    %567 = vmatmul.mubr.f32.gmra.mxu0 %v473
    %v568 = vpop.f32.mrf.mxu0
    %v569 = vadd.f32 0.0, %v568
    %v570 = vpop.f32.mrf.mxu0
    %571 = vmatprep.mubr.f32.mxu0 0.0
    %572 = vmatmul.mubr.f32.gmra.mxu0 %v476
    %v573 = vpop.f32.mrf.mxu0
    %v574 = vadd.f32 0.0, %v573
    %v575 = vpop.f32.mrf.mxu0
    %576 = vmatprep.mubr.f32.mxu0 0.0
    %577 = vmatmul.mubr.f32.gmra.mxu0 %v479
    %v578 = vpop.f32.mrf.mxu0
    %v579 = vadd.f32 0.0, %v578
    %v580 = vpop.f32.mrf.mxu0
    %581 = vmatprep.mubr.f32.mxu0 0.0
    %582 = vmatmul.mubr.f32.gmra.mxu0 %v482
    %v583 = vpop.f32.mrf.mxu0
    %v584 = vadd.f32 0.0, %v583
    %v585 = vpop.f32.mrf.mxu0
    %586 = vmatprep.mubr.f32.mxu0 0.0
    %587 = vmatmul.mubr.f32.gmra.mxu0 %v485
    %v588 = vpop.f32.mrf.mxu0
    %v589 = vadd.f32 0.0, %v588
    %v590 = vpop.f32.mrf.mxu0
    %591 = vdwg.mxu0
    %594 = vrot.lane.b32.xlu0 %v564, 8
    %v595 = vpop.permute.xlu0 %594
    %596 = vrot.lane.b32.xlu0 %v569, 8
    %v597 = vpop.permute.xlu0 %596
    %602 = vrot.lane.b32.xlu0 %v574, 16
    %v603 = vpop.permute.xlu0 %602
    %604 = vrot.lane.b32.xlu0 %v579, 16
    %v605 = vpop.permute.xlu0 %604
    %610 = vrot.lane.b32.xlu0 %v584, 24
    %v611 = vpop.permute.xlu0 %610
    %612 = vrot.lane.b32.xlu0 %v589, 24
    %v613 = vpop.permute.xlu0 %612
    %v616 = vsel %vm212, %v554, %v595
    %v617 = vsel %vm212, %v559, %v597
    %vm618 = vcmask 130048
    %v619 = vsel %vm618, %v616, %v603
    %v620 = vsel %vm618, %v617, %v605
    %vm621 = vcmask 195584
    %v622 = vsel %vm621, %v619, %v611
    %v623 = vsel %vm621, %v620, %v613
    %v624 = vld [vmem:[#allocation7] sm:$0xff]
    %v625 = vld [vmem:[#allocation7 + $0x8] sm:$0xff]
    %v626 = vld [vmem:[#allocation7 + $0x10] sm:$0xff]
    %v627 = vld [vmem:[#allocation7 + $0x18] sm:$0xff]
    %v628 = vld [vmem:[%s4] sm:$0x1]
    %v630 = vlaneseq
    %v631 = vshrl.u32 %v630, 7
    %v632 = vsub.s32 0, %v631
    %v633 = vrot.slane %v628, %v632
    %v636 = vsel %vm92, %v622, 0
    %v639 = vsel %vm92, %v623, 0
    %641 = vmatprep.subr.mxu0 0.0
    %642 = vmatpush1.msra.mxu0 0.0
    %643 = vmatprep.subr.mxu0 0.0
    %644 = vmatpush1.msra.mxu0 0.0
    %645 = vmatprep.subr.mxu0 0.0
    %646 = vmatpush1.msra.mxu0 0.0
    %647 = vmatprep.subr.mxu0 0.0
    %648 = vmatpush1.msra.mxu0 0.0
    %649 = vmatprep.subr.mxu0 0.0
    %650 = vmatpush1.msra.mxu0 0.0
    %651 = vmatprep.subr.mxu0 0.0
    %652 = vmatpush1.msra.mxu0 0.0
    %653 = vmatprep.subr.mxu0 0.0
    %654 = vmatpush1.msra.mxu0 0.0
    %655 = vmatprep.subr.mxu0 0.0
    %656 = vmatpush1.msra.mxu0 0.0
    %657 = vmatprep.subr.mxu0 0.0
    %658 = vmatpush1.msra.mxu0 0.0
    %659 = vmatprep.subr.mxu0 0.0
    %660 = vmatpush1.msra.mxu0 0.0
    %661 = vmatprep.subr.mxu0 0.0
    %662 = vmatpush1.msra.mxu0 0.0
    %663 = vmatprep.subr.mxu0 0.0
    %664 = vmatpush1.msra.mxu0 0.0
    %665 = vmatprep.subr.mxu0 0.0
    %666 = vmatpush1.msra.mxu0 %v627
    %667 = vmatprep.subr.mxu0 0.0
    %668 = vmatpush1.msra.mxu0 %v626
    %669 = vmatprep.subr.mxu0 0.0
    %670 = vmatpush1.msra.mxu0 %v625
    %671 = vmatprep.subr.mxu0 0.0
    %672 = vmatpush1.msra.mxu0 %v624
    %673 = vmatprep.subr.mxu0 0.0
    %674 = vmatpush2.msra.mxu0 0.0
    %675 = vmatprep.subr.mxu0 0.0
    %676 = vmatpush2.msra.mxu0 0.0
    %677 = vmatprep.subr.mxu0 0.0
    %678 = vmatpush2.msra.mxu0 0.0
    %679 = vmatprep.subr.mxu0 0.0
    %680 = vmatpush2.msra.mxu0 0.0
    %681 = vmatprep.subr.mxu0 0.0
    %682 = vmatpush2.msra.mxu0 0.0
    %683 = vmatprep.subr.mxu0 0.0
    %684 = vmatpush2.msra.mxu0 0.0
    %685 = vmatprep.subr.mxu0 0.0
    %686 = vmatpush2.msra.mxu0 0.0
    %687 = vmatprep.subr.mxu0 0.0
    %688 = vmatpush2.msra.mxu0 0.0
    %689 = vmatprep.subr.mxu0 0.0
    %690 = vmatpush2.msra.mxu0 0.0
    %691 = vmatprep.subr.mxu0 0.0
    %692 = vmatpush2.msra.mxu0 0.0
    %693 = vmatprep.subr.mxu0 0.0
    %694 = vmatpush2.msra.mxu0 0.0
    %695 = vmatprep.subr.mxu0 0.0
    %696 = vmatpush2.msra.mxu0 0.0
    %697 = vmatprep.subr.mxu0 0.0
    %698 = vmatpush2.msra.mxu0 0.0
    %699 = vmatprep.subr.mxu0 0.0
    %700 = vmatpush2.msra.mxu0 0.0
    %701 = vmatprep.subr.mxu0 0.0
    %702 = vmatpush2.msra.mxu0 0.0
    %703 = vmatprep.subr.mxu0 0.0
    %704 = vmatpush2.msra.mxu0 0.0
    %705 = vmatprep.mubr.f32.mxu0 0.0
    %706 = vmatmul.mubr.f32.gmra.mxu0 %v636
    %v707 = vpop.f32.mrf.mxu0
    %v708 = vadd.f32 %v633, %v707
    %v709 = vpop.f32.mrf.mxu0
    %710 = vmatprep.mubr.f32.mxu0 0.0
    %711 = vmatmul.mubr.f32.gmra.mxu0 %v639
    %v712 = vpop.f32.mrf.mxu0
    %v713 = vadd.f32 %v633, %v712
    %v714 = vpop.f32.mrf.mxu0
    %715 = vdwg.mxu0
    %716 = vst.msk [vmem:[#allocation10] sm:$0xff] %vm92, %v708
    %717 = vst.msk [vmem:[#allocation10 + $0x8] sm:$0xff] %vm92, %v713
    // Predicated region
    $region42: #{multi_head_attention.1} parent=1 // pred_check
      _
    $region43: #{multi_head_attention.1} parent=1 // pred_check_branch
      %719 = sbr.rel (0) target = $region45
    $region44: #{multi_head_attention.1} parent=1 // pred_region
      %s721 = ssub.s32 256, 256
      %722 = vsyncadd [#allocation4], %s721
      %s723 = sshll.u32 [#allocation10], 4
      %s724 = int_to_ptr.vmem [resolvable:$true] %s723
      %729 = dma.vmem_to_hbm [thread:$0]  %s724, 256, %s6, [#allocation4], 128, 128, 8
    $region45: #{multi_head_attention.1} parent=1 // pred_fallthru
      _
    // Predicated region
    $region46: #{multi_head_attention.1} parent=1 // pred_check
      _
    $region47: #{multi_head_attention.1} parent=1 // pred_check_branch
      %731 = sbr.rel (0) target = $region49
    $region48: #{multi_head_attention.1} parent=1 // pred_region
      %732 = dma.done [#allocation4], 256
    $region49: #{multi_head_attention.1} parent=1 // pred_fallthru
      _
    %733 = vsyncpa [#allocation3], 1
    %734 = vsyncpa [#allocation6], 1
    %735 = vsyncpa [#allocation9], 1
    %736 = vsyncpa [#allocation4], 1

</llo_original>
